<compile_context>
chip_gen: v7x
topology: tpu7x:2x2x1
jax: 0.10.0
libtpu: 0.0.40
codegen_flags: <defaults>
</compile_context>

<pallas_src>
import functools

import numpy as np

import jax
import jax.numpy as jnp
from jax import lax
from jax.experimental import pallas as pl
from jax.experimental.pallas import tpu as pltpu


def _rup(x, m):
    return -(-x // m) * m


def _fused_pool_kernel(x_ref, ph_ref, pwt_ref, o_ref):
    # x_ref:   (TN, H, W)   TN image slices of the current grid step
    # ph_ref:  (Ho, H)      composed row-selection matrix, scale (1/9)^k folded in
    # pwt_ref: (W, Wo)      composed column-selection matrix (transposed)
    # o_ref:   (TN, Ho, Wo)
    tn, h, w = x_ref.shape
    _, ho, wo = o_ref.shape
    ph = ph_ref[...]
    pwt = pwt_ref[...]

    # ---- W-pool (lane-axis contraction) ----
    if h % 8 == 0:
        # Merging (tn, h) is layout-identical when h % 8 == 0 (free view), so the
        # whole W-pool is ONE MXU matmul with M = tn*h (fills MXU sublanes).
        xf = x_ref[...].reshape(tn * h, w)
        t = jnp.dot(xf, pwt, preferred_element_type=jnp.float32)      # (tn*h, wo)
        t = t.reshape(tn, h, wo)
    else:
        # General H: keep the 3-D shape and use a batched contraction so no
        # (8,128)-crossing reshape/relayout copies are materialized.
        pwt_b = jnp.broadcast_to(pwt[None, :, :], (tn, w, wo))
        t = jnp.einsum('nhw,nwv->nhv', x_ref[...], pwt_b,
                       preferred_element_type=jnp.float32)            # (tn, h, wo)

    # ---- H-pool: one batched MXU matmul + ONE full-block store ----
    ph_b = jnp.broadcast_to(ph[None, :, :], (tn, ho, h))
    o = jnp.einsum('noh,nhw->now', ph_b, t,
                   preferred_element_type=jnp.float32)                # (tn, ho, wo)
    o_ref[...] = o.astype(o_ref.dtype)


@functools.lru_cache(maxsize=None)
def _selection_matrices(h, w, k):
    """Host-side (numpy) composed 3x3/stride-2/pad-1 selection matrices.

    Per-level matrix P[i, r] = 1 iff |r - 2*i| <= 1 and r in-bounds (this
    exactly reproduces zero padding with divisor 9).  The composition has exact
    small-integer entries; the full (1/9)^k scale is folded into the H matrix.
    """
    def compose(n_in):
        p_total = None
        n = n_in
        for _ in range(k):
            n_out = (n - 1) // 2 + 1   # = floor((n + 2*pad - 3)/2) + 1
            p = (np.abs(np.arange(n)[None, :] - 2 * np.arange(n_out)[:, None]) <= 1
                 ).astype(np.float64)                                  # (n_out, n)
            p_total = p if p_total is None else p @ p_total
            n = n_out
        return p_total

    ph = compose(h) * (1.0 / 9.0) ** k          # (Ho, H), scale folded in
    pwt = compose(w).T                          # (W, Wo), unscaled (exact ints)
    return np.asarray(ph, np.float32), np.asarray(pwt, np.float32)


def _vmem_capacity_bytes():
    try:
        info = pltpu.get_tpu_info()
        cap = getattr(info, "vmem_capacity_bytes", None)
        if cap:
            return int(cap)
    except Exception:
        pass
    return 64 * 1024 * 1024   # conservative: v7x per-TC VMEM


def _fused_avg_pool_pyramid(x, k):
    """x: (N, H, W) -> (N, Ho_k, Wo_k); k fused AvgPool2d(3, 2, 1) levels."""
    N, H, W = x.shape
    ph_np, pwt_np = _selection_matrices(H, W, k)
    Ho, Wo = int(ph_np.shape[0]), int(pwt_np.shape[1])
    ph = jnp.asarray(ph_np)
    pwt = jnp.asarray(pwt_np)

    # Generation-aware VMEM budget (v7x: 64 MiB/TC; v5e/v6e: 128 MiB).
    vmem_cap = _vmem_capacity_bytes()
    two_tc = vmem_cap <= 64 * 1024 * 1024            # v7x-style part heuristic
    vmem_limit = min(int(vmem_cap * 3 // 4), 96 * 1024 * 1024)
    budget = int(vmem_limit * 0.85)

    def blk_bytes(tn):
        f = 4
        in_blk = tn * _rup(H, 8) * _rup(W, 128) * f          # input block
        out_blk = tn * _rup(Ho, 8) * _rup(Wo, 128) * f       # output block
        t_blk = tn * _rup(H, 8) * _rup(Wo, 128) * f          # W-pool intermediate
        phb_blk = tn * _rup(Ho, 8) * _rup(H, 128) * f        # broadcast ph in H-pool
        ph_blk = _rup(Ho, 8) * _rup(H, 128) * f
        pwt_blk = _rup(W, 8) * _rup(Wo, 128) * f
        # inputs/outputs are double-buffered by the pipeline
        return 2 * (in_blk + out_blk) + t_blk + phb_blk + 2 * (ph_blk + pwt_blk)

    # Slices per grid step: largest divisor of N whose block fits the budget
    # (no zero-pad concatenate, no ragged blocks -> exact tiling).
    divs = [d for d in range(1, N + 1) if N % d == 0 and blk_bytes(d) <= budget]
    tn = max(divs) if divs else 1
    if two_tc and divs:
        # Prefer an even number of grid steps on 2-TensorCore chips so megacore
        # sharding ("parallel") stays balanced, unless it over-shrinks the block.
        even = [d for d in divs if (N // d) % 2 == 0]
        if even and max(even) * 2 >= tn:
            tn = max(even)
    vmem_limit = max(vmem_limit, min(blk_bytes(tn) + (4 << 20), vmem_cap))
    steps = N // tn

    out = pl.pallas_call(
        _fused_pool_kernel,
        out_shape=jax.ShapeDtypeStruct((N, Ho, Wo), x.dtype),
        grid=(steps,),
        in_specs=[
            pl.BlockSpec((tn, H, W), lambda n: (n, 0, 0)),
            pl.BlockSpec((Ho, H), lambda n: (0, 0)),
            pl.BlockSpec((W, Wo), lambda n: (0, 0)),
        ],
        out_specs=pl.BlockSpec((tn, Ho, Wo), lambda n: (n, 0, 0)),
        compiler_params=pltpu.CompilerParams(
            dimension_semantics=("parallel",),
            vmem_limit_bytes=int(vmem_limit),
        ),
        cost_estimate=pl.CostEstimate(
            flops=2 * N * Wo * (H * W + Ho * H),
            transcendentals=0,
            bytes_accessed=4 * N * (H * W + Ho * Wo) + 4 * (Ho * H + W * Wo),
        ),
    )(x, ph, pwt)
    return out


class InputProjectionA:
    """JAX/Pallas port of ESPNet InputProjectionA (no learnable parameters)."""

    def __init__(self, samplingTimes: int):
        self.sampling_times = int(samplingTimes)

    def __call__(self, x):
        # x: (B, C, H, W) NCHW, like the PyTorch module.
        if self.sampling_times == 0:
            return x
        B, C, H, W = x.shape
        y = _fused_avg_pool_pyramid(x.reshape(B * C, H, W), self.sampling_times)
        Ho, Wo = y.shape[-2], y.shape[-1]
        return y.reshape(B, C, Ho, Wo)


def _reference(x, sampling_times):
    """Pure-JAX reference matching torch.nn.AvgPool2d(3, 2, 1) applied k times."""
    y = x
    for _ in range(sampling_times):
        s = lax.reduce_window(
            y, 0.0, lax.add,
            window_dimensions=(1, 1, 3, 3),
            window_strides=(1, 1, 2, 2),
            padding=((0, 0), (0, 0), (1, 1), (1, 1)),
        )
        y = s / 9.0
    return y


if __name__ == "__main__":
    key = jax.random.PRNGKey(0)
    x = jax.random.normal(key, (2, 4, 16, 16), dtype=jnp.float32)

    # samplingTimes = 2: 16 -> 8 -> 4, fused into one kernel call.
    out = InputProjectionA(2)(x)
    out = jax.block_until_ready(out)
    ref = _reference(x, 2)
    assert out.shape == ref.shape == (2, 4, 4, 4), (out.shape, ref.shape)
    assert jnp.allclose(out, ref, atol=1e-5, rtol=1e-5), "mismatch vs reference (k=2)"

    # samplingTimes = 3: 16 -> 8 -> 4 -> 2 (exercises deeper matrix composition).
    out3 = jax.block_until_ready(InputProjectionA(3)(x))
    ref3 = _reference(x, 3)
    assert out3.shape == ref3.shape == (2, 4, 2, 2), (out3.shape, ref3.shape)
    assert jnp.allclose(out3, ref3, atol=1e-5, rtol=1e-5), "mismatch vs reference (k=3)"

    print("KERNEL_OK")
</pallas_src>

<mosaic_0001>
module attributes {stable_mosaic.version = 11 : i64} {
  func.func @_fused_pool_kernel(%arg0: i32, %arg1: memref<4x16x16xf32, #tpu.memory_space<vmem>>, %arg2: memref<4x16xf32, #tpu.memory_space<vmem>>, %arg3: memref<16x4xf32, #tpu.memory_space<vmem>>, %arg4: memref<4x4x4xf32, #tpu.memory_space<vmem>>) attributes {dimension_semantics = [#tpu.dimension_semantics<parallel>], iteration_bounds = array<i64: 2>, scalar_prefetch = 0 : i64, scratch_operands = 0 : i64, tpu.core_type = #tpu.core_type<tc>, window_params = [{transform_indices = @transform_0, window_bounds = array<i64: 4, 16, 16>}, {pipeline_mode = #tpu.pipeline_mode<synchronous>, transform_indices = @transform_1, window_bounds = array<i64: 4, 16>}, {pipeline_mode = #tpu.pipeline_mode<synchronous>, transform_indices = @transform_2, window_bounds = array<i64: 16, 4>}, {transform_indices = @transform_3, window_bounds = array<i64: 4, 4, 4>}]} {
    %c0 = arith.constant 0 : index
    %c0_0 = arith.constant 0 : index
    %0 = vector.load %arg2[%c0, %c0_0] : memref<4x16xf32, #tpu.memory_space<vmem>>, vector<4x16xf32>
    %c0_1 = arith.constant 0 : index
    %c0_2 = arith.constant 0 : index
    %1 = vector.load %arg3[%c0_1, %c0_2] : memref<16x4xf32, #tpu.memory_space<vmem>>, vector<16x4xf32>
    %c0_3 = arith.constant 0 : index
    %c0_4 = arith.constant 0 : index
    %c0_5 = arith.constant 0 : index
    %2 = vector.load %arg1[%c0_3, %c0_4, %c0_5] : memref<4x16x16xf32, #tpu.memory_space<vmem>>, vector<4x16x16xf32>
    %3 = vector.shape_cast %2 : vector<4x16x16xf32> to vector<64x16xf32>
    %cst = arith.constant dense<0.000000e+00> : vector<64x4xf32>
    %4 = tpu.matmul %3, %1, %cst {dimension_numbers = #tpu.dot_dimension_numbers<[1], [0], [0], [1], [0, 0, 1, 1], [], []>} : vector<64x16xf32>, vector<16x4xf32>, vector<64x4xf32> -> vector<64x4xf32>
    %5 = vector.shape_cast %4 : vector<64x4xf32> to vector<4x16x4xf32>
    %6 = vector.shape_cast %0 : vector<4x16xf32> to vector<1x4x16xf32>
    %7 = vector.shape_cast %6 : vector<1x4x16xf32> to vector<1x4x16xf32>
    %8 = vector.broadcast %7 : vector<1x4x16xf32> to vector<4x4x16xf32>
    "tpu.trace_start"() <{level = 10 : i32, message = "noh,nhw->now"}> : () -> ()
    %cst_6 = arith.constant dense<0.000000e+00> : vector<4x4x4xf32>
    %9 = tpu.matmul %8, %5, %cst_6 {dimension_numbers = #tpu.dot_dimension_numbers<[2], [1], [1], [2], [0, 0, 0, 1, 1, 2], [0], [0]>} : vector<4x4x16xf32>, vector<4x16x4xf32>, vector<4x4x4xf32> -> vector<4x4x4xf32>
    "tpu.trace_stop"() : () -> ()
    %c0_7 = arith.constant 0 : index
    %c0_8 = arith.constant 0 : index
    %c0_9 = arith.constant 0 : index
    %10 = vector.load %arg4[%c0_7, %c0_8, %c0_9] : memref<4x4x4xf32, #tpu.memory_space<vmem>>, vector<4x4x4xf32>
    tpu.vector_store %arg4[%c0_7, %c0_8, %c0_9], %9 {strides = array<i32>} : memref<4x4x4xf32, #tpu.memory_space<vmem>>, vector<4x4x4xf32>,
    return
  }
  func.func @transform_0(%arg0: i32) -> (i32, i32, i32) {
    %c0_i32 = arith.constant 0 : i32
    %c0_i32_0 = arith.constant 0 : i32
    %c0_i32_1 = arith.constant 0 : i32
    return %arg0, %c0_i32, %c0_i32_0 : i32, i32, i32
  }
  func.func @transform_1(%arg0: i32) -> (i32, i32) {
    %c0_i32 = arith.constant 0 : i32
    %c0_i32_0 = arith.constant 0 : i32
    %c0_i32_1 = arith.constant 0 : i32
    return %c0_i32, %c0_i32_0 : i32, i32
  }
  func.func @transform_2(%arg0: i32) -> (i32, i32) {
    %c0_i32 = arith.constant 0 : i32
    %c0_i32_0 = arith.constant 0 : i32
    %c0_i32_1 = arith.constant 0 : i32
    return %c0_i32, %c0_i32_0 : i32, i32
  }
  func.func @transform_3(%arg0: i32) -> (i32, i32, i32) {
    %c0_i32 = arith.constant 0 : i32
    %c0_i32_0 = arith.constant 0 : i32
    %c0_i32_1 = arith.constant 0 : i32
    return %arg0, %c0_i32, %c0_i32_0 : i32, i32, i32
  }
}

</mosaic_0001>

<llo_original>
// kernel: tpu_custom_call.1
$region0: #{tpu_custom_call.1}
  #allocation0 [shape = 'u32[]', space=smem, size = 0x4, offset = 0x4, fixed_abs, tag = 'smem constant byte address 0x4 - core index']
  #allocation1 [shape = 'u32[144,128]{1,0:T(1,128)}', space=vmem, size = 0x12000, scoped, tag = 'internal scratch']
  %s0 = inlined_call_operand.hbm [shape: f32[8,16,16], index: 0, kind: input, shape index: {}]
  %s1 = inlined_call_operand.vmem [shape: f32[4,16], index: 1, kind: input, shape index: {}]
  %s2 = inlined_call_operand.vmem [shape: f32[16,4], index: 2, kind: input, shape index: {}]
  %s3 = inlined_call_operand.vmem [shape: f32[8,4,4], index: 3, kind: output, shape index: {}]
  %s4 = sld [smem:[#allocation0]]
  $region49: #{tpu_custom_call.1} parent=0
    _
  %s6 = ssub.s32 1, %s4
  %s7 = scalar_select 0, %s6, %s4
  $region1: #{tpu_custom_call.1} parent=0
    #allocation2 [shape = 'u8[65536]{0}', space=vmem, size = 0x10000, scoped, tag = 'input window, operand 0']
    #allocation3 [shape = 's32[2]{0}', space=sflag, size = 0x8, scoped, tag = 'scoped memory for tpu_custom_call.1']
    %8 = vsyncpa [#allocation3], 0
    %s9 = scalar_lea.sflag [#allocation3], 1
    %10 = vsyncpa %s9, 0
    loop: start=0, step=1, limit=4
    $region2: #{tpu_custom_call.1} parent=1 // loop_pre_header
      _
    $region3: #{tpu_custom_call.1} parent=1 // loop_header
      %s12 = sphi 0, %s16
      %p13 = scmp.ge.s32.totalorder %s12, 4
      %s22 = sphi 0, %s24
      %s25 = sphi 0, %s22
      %s26 = sphi 0, %s25
      %s42 = sphi 0, %s26
      %s46 = sphi 0, %s46
      %s48 = sphi 0, %s46
      %s49 = sphi 0, %s48
      %s63 = sphi 0, %s49
      %s67 = sphi 0, %s67
      %s69 = sphi 0, %s67
      %s70 = sphi 0, %s69
      %s84 = sphi 0, %s70
      %s90 = sphi 0, %s92
      %s93 = sphi 0, %s90
      %s94 = sphi 0, %s93
      %s110 = sphi 0, %s94
    $region4: #{tpu_custom_call.1} parent=1 // loop_header_branch
      %15 = sbr.rel (%p13) target = $region8
    $region5: #{tpu_custom_call.1} parent=1 // loop_body
      %s17 = ssub.s32 %s12, 1
      %s18 = ssub.s32 %s12, 2
      %s19 = sadd.s32 %s12, 1
      %s20 = ssub.s32 %s12, %s19
      %p21 = scmp.eq.s32.totalorder %s20, 0
      %s23 = sadd.s32 %s22, 1
      %s24 = scalar_select %p21, %s22, %s23
      %p27 = pneg %p21
      %p28 = scmp.eq.s32.totalorder %s12, 1
      %p29 = por %p27, %p28
      %p30 = scmp.ne.s32.totalorder %s22, %s25
      %p31 = scmp.eq.s32.totalorder %s12, 0
      %p32 = por %p30, %p31
      %p33 = scmp.ne.s32.totalorder %s22, %s25
      %p34 = scmp.eq.s32.totalorder %s17, 1
      %p35 = por %p33, %p34
      %p36 = scmp.ne.s32.totalorder %s25, %s26
      %p37 = scmp.eq.s32.totalorder %s17, 0
      %p38 = por %p36, %p37
      %p39 = scmp.ne.s32.totalorder %s25, %s26
      %p40 = scmp.eq.s32.totalorder %s18, 1
      %p41 = por %p39, %p40
      %p43 = scmp.ne.s32.totalorder %s26, %s42
      %p44 = scmp.eq.s32.totalorder %s18, 0
      %p45 = por %p43, %p44
      %s47 = sadd.s32 %s46, 1
      %p50 = scmp.eq.s32.totalorder %s12, 1
      %p51 = scmp.ne.s32.totalorder %s46, %s48
      %p52 = scmp.eq.s32.totalorder %s12, 0
      %p53 = por %p51, %p52
      %p54 = scmp.ne.s32.totalorder %s46, %s48
      %p55 = scmp.eq.s32.totalorder %s17, 1
      %p56 = por %p54, %p55
      %p57 = scmp.ne.s32.totalorder %s48, %s49
      %p58 = scmp.eq.s32.totalorder %s17, 0
      %p59 = por %p57, %p58
      %p60 = scmp.ne.s32.totalorder %s48, %s49
      %p61 = scmp.eq.s32.totalorder %s18, 1
      %p62 = por %p60, %p61
      %p64 = scmp.ne.s32.totalorder %s49, %s63
      %p65 = scmp.eq.s32.totalorder %s18, 0
      %p66 = por %p64, %p65
      %s68 = sadd.s32 %s67, 1
      %p71 = scmp.eq.s32.totalorder %s12, 1
      %p72 = scmp.ne.s32.totalorder %s67, %s69
      %p73 = scmp.eq.s32.totalorder %s12, 0
      %p74 = por %p72, %p73
      %p75 = scmp.ne.s32.totalorder %s67, %s69
      %p76 = scmp.eq.s32.totalorder %s17, 1
      %p77 = por %p75, %p76
      %p78 = scmp.ne.s32.totalorder %s69, %s70
      %p79 = scmp.eq.s32.totalorder %s17, 0
      %p80 = por %p78, %p79
      %p81 = scmp.ne.s32.totalorder %s69, %s70
      %p82 = scmp.eq.s32.totalorder %s18, 1
      %p83 = por %p81, %p82
      %p85 = scmp.ne.s32.totalorder %s70, %s84
      %p86 = scmp.eq.s32.totalorder %s18, 0
      %p87 = por %p85, %p86
      %s88 = ssub.s32 %s12, %s19
      %p89 = scmp.eq.s32.totalorder %s88, 0
      %s91 = sadd.s32 %s90, 1
      %s92 = scalar_select %p89, %s90, %s91
      %p95 = pneg %p89
      %p96 = scmp.eq.s32.totalorder %s12, 1
      %p97 = por %p95, %p96
      %p98 = scmp.ne.s32.totalorder %s90, %s93
      %p99 = scmp.eq.s32.totalorder %s12, 0
      %p100 = por %p98, %p99
      %p101 = scmp.ne.s32.totalorder %s90, %s93
      %p102 = scmp.eq.s32.totalorder %s17, 1
      %p103 = por %p101, %p102
      %p104 = scmp.ne.s32.totalorder %s93, %s94
      %p105 = scmp.eq.s32.totalorder %s17, 0
      %p106 = por %p104, %p105
      %p107 = scmp.ne.s32.totalorder %s93, %s94
      %p108 = scmp.eq.s32.totalorder %s18, 1
      %p109 = por %p107, %p108
      %p111 = scmp.ne.s32.totalorder %s94, %s110
      %p112 = scmp.eq.s32.totalorder %s18, 0
      %p113 = por %p111, %p112
      %p114 = scmp.le.s32.totalorder 1, %s12
      %p115 = scmp.lt.s32.totalorder %s12, 3
      %p116 = pnand %p114, %p115
      %p117 = pneg %p116
      // Predicated region
      $region9: #{tpu_custom_call.1} parent=5 // pred_check
        _
      $region10: #{tpu_custom_call.1} parent=5 // pred_check_branch
        %119 = sbr.rel (%p116) target = $region12
      $region11: #{tpu_custom_call.1} parent=5 // pred_region
        %s120 = ssub.s32 %s12, 1
        // Predicated region
        $region13: #{tpu_custom_call.1} parent=11 // pred_check
          %p121 = pneg %p59
        $region14: #{tpu_custom_call.1} parent=11 // pred_check_branch
          %123 = sbr.rel (%p121) target = $region16
        $region15: #{tpu_custom_call.1} parent=11 // pred_region
          _
        $region16: #{tpu_custom_call.1} parent=11 // pred_fallthru
          _
        // Predicated region
        $region17: #{tpu_custom_call.1} parent=11 // pred_check
          %p124 = pneg %p80
        $region18: #{tpu_custom_call.1} parent=11 // pred_check_branch
          %126 = sbr.rel (%p124) target = $region20
        $region19: #{tpu_custom_call.1} parent=11 // pred_region
          _
        $region20: #{tpu_custom_call.1} parent=11 // pred_fallthru
          _
      $region12: #{tpu_custom_call.1} parent=5 // pred_fallthru
        _
      %p127 = scmp.lt.s32.totalorder %s12, 2
      // Predicated region
      $region21: #{tpu_custom_call.1} parent=5 // pred_check
        %p128 = pneg %p127
      $region22: #{tpu_custom_call.1} parent=5 // pred_check_branch
        %130 = sbr.rel (%p128) target = $region24
      $region23: #{tpu_custom_call.1} parent=5 // pred_region
        // Predicated region
        $region25: #{tpu_custom_call.1} parent=23 // pred_check
          %p131 = pneg %p32
        $region26: #{tpu_custom_call.1} parent=23 // pred_check_branch
          %133 = sbr.rel (%p131) target = $region28
        $region27: #{tpu_custom_call.1} parent=23 // pred_region
          %s134 = sand.u32 %s22, 1
          %s135 = scalar_lea.sflag [#allocation3], %s134
          %s136 = sand.u32 %s22, 1
          %s137 = smul.addr %s136, 64
          %s138 = scalar_lea.vmem [#allocation2], %s137
          %s139 = smul.u32 4, %s12
          %s141 = ssub.s32 1024, 1024
          %142 = vsyncadd %s135, %s141
          %s143 = smul.addr %s139, 2
          %s144 = smul.addr %s143, 128
          %s145 = scalar_lea.hbm %s0, %s144
          %s146 = sshll.u32 %s138, 4
          %s147 = int_to_ptr.vmem [resolvable:$true] %s146
          %152 = dma.hbm_to_vmem [thread:$0]  %s145, 1024, %s147, %s135, 128, 128, 8
        $region28: #{tpu_custom_call.1} parent=23 // pred_fallthru
          _
      $region24: #{tpu_custom_call.1} parent=5 // pred_fallthru
        _
      %p153 = scmp.le.s32.totalorder 1, %s12
      %p154 = scmp.lt.s32.totalorder %s12, 3
      %p155 = pnand %p153, %p154
      %p156 = pneg %p155
      // Predicated region
      $region29: #{tpu_custom_call.1} parent=5 // pred_check
        _
      $region30: #{tpu_custom_call.1} parent=5 // pred_check_branch
        %158 = sbr.rel (%p155) target = $region32
      $region31: #{tpu_custom_call.1} parent=5 // pred_region
        %s159 = ssub.s32 %s12, 1
        %s160 = sand.u32 %s25, 1
        %s161 = scalar_lea.sflag [#allocation3], %s160
        %s162 = sand.u32 %s25, 1
        %s163 = smul.addr %s162, 64
        %s164 = scalar_lea.vmem [#allocation2], %s163
        // Predicated region
        $region33: #{tpu_custom_call.1} parent=31 // pred_check
          %p165 = pneg %p38
        $region34: #{tpu_custom_call.1} parent=31 // pred_check_branch
          %167 = sbr.rel (%p165) target = $region36
        $region35: #{tpu_custom_call.1} parent=31 // pred_region
          %168 = dma.done %s161, 1024
        $region36: #{tpu_custom_call.1} parent=31 // pred_fallthru
          _
        %s169 = sand.u32 %s25, 1
        %s170 = scalar_lea.sflag [#allocation3], %s169
        %s171 = sand.u32 %s25, 1
        %s172 = smul.addr %s171, 64
        %s173 = scalar_lea.vmem [#allocation2], %s172
        %p174 = pneg %p38
        %p175 = pneg %p35
        %p176 = pneg %p59
        %p177 = pneg %p56
        %p178 = pneg %p80
        %p179 = pneg %p77
        %p180 = pneg %p106
        %p181 = pneg %p103
        %s182 = smul.u32 4, %s17
        %p183 = scmp.lt.s32.totalorder %s182, 7
        %s184 = scalar_select %p183, %s182, 7
        %s185 = smul.addr %s184, 4
        %s186 = scalar_lea.vmem %s3, %s185
        %s187 = smul.u32 4, %s17
        %s188 = smul.u32 4, %s17
        %p189 = scmp.lt.s32.totalorder %s188, 7
        %s190 = scalar_select %p189, %s188, 7
        %s191 = smul.addr %s190, 4
        %s192 = scalar_lea.vmem %s3, %s191
        %s193 = smul.u32 4, %s17
        %v194 = vld [vmem:[%s1] sm:$0xf]
        %v195 = vld [vmem:[%s2] sm:$0xff]
        %v196 = vld [vmem:[%s2 + $0x8] sm:$0xff]
        %v197 = vld [vmem:[%s164] sm:$0xff]
        %v198 = vld [vmem:[%s164 + $0x8] sm:$0xff]
        %v199 = vld [vmem:[%s164 + $0x10] sm:$0xff]
        %v200 = vld [vmem:[%s164 + $0x18] sm:$0xff]
        %v201 = vld [vmem:[%s164 + $0x20] sm:$0xff]
        %v202 = vld [vmem:[%s164 + $0x28] sm:$0xff]
        %v203 = vld [vmem:[%s164 + $0x30] sm:$0xff]
        %v204 = vld [vmem:[%s164 + $0x38] sm:$0xff]
        %vm205 = vcmask 130048
        %v207 = vsel %vm205, %v197, 0
        %v210 = vsel %vm205, %v198, 0
        %v213 = vsel %vm205, %v199, 0
        %v216 = vsel %vm205, %v200, 0
        %v219 = vsel %vm205, %v201, 0
        %v222 = vsel %vm205, %v202, 0
        %v225 = vsel %vm205, %v203, 0
        %v228 = vsel %vm205, %v204, 0
        %230 = vmatprep.subr.mxu0 0.0
        %231 = vmatpush1.msra.mxu0 %v195
        %232 = vmatprep.subr.mxu0 0.0
        %233 = vmatpush1.msra.mxu0 %v196
        %234 = vmatprep.subr.mxu0 0.0
        %235 = vmatpush1.msra.mxu0 0.0
        %236 = vmatprep.subr.mxu0 0.0
        %237 = vmatpush1.msra.mxu0 0.0
        %238 = vmatprep.subr.mxu0 0.0
        %239 = vmatpush1.msra.mxu0 0.0
        %240 = vmatprep.subr.mxu0 0.0
        %241 = vmatpush1.msra.mxu0 0.0
        %242 = vmatprep.subr.mxu0 0.0
        %243 = vmatpush1.msra.mxu0 0.0
        %244 = vmatprep.subr.mxu0 0.0
        %245 = vmatpush1.msra.mxu0 0.0
        %246 = vmatprep.subr.mxu0 0.0
        %247 = vmatpush1.msra.mxu0 0.0
        %248 = vmatprep.subr.mxu0 0.0
        %249 = vmatpush1.msra.mxu0 0.0
        %250 = vmatprep.subr.mxu0 0.0
        %251 = vmatpush1.msra.mxu0 0.0
        %252 = vmatprep.subr.mxu0 0.0
        %253 = vmatpush1.msra.mxu0 0.0
        %254 = vmatprep.subr.mxu0 0.0
        %255 = vmatpush1.msra.mxu0 0.0
        %256 = vmatprep.subr.mxu0 0.0
        %257 = vmatpush1.msra.mxu0 0.0
        %258 = vmatprep.subr.mxu0 0.0
        %259 = vmatpush1.msra.mxu0 0.0
        %260 = vmatprep.subr.mxu0 0.0
        %261 = vmatpush1.msra.mxu0 0.0
        %262 = vmatprep.subr.mxu0 0.0
        %263 = vmatpush1.msra.mxu0 0.0
        %264 = vmatprep.subr.mxu0 0.0
        %265 = vmatpush1.msra.mxu0 0.0
        %266 = vmatprep.subr.mxu0 0.0
        %267 = vmatpush1.msra.mxu0 0.0
        %268 = vmatprep.subr.mxu0 0.0
        %269 = vmatpush1.msra.mxu0 0.0
        %270 = vmatprep.subr.mxu0 0.0
        %271 = vmatpush1.msra.mxu0 0.0
        %272 = vmatprep.subr.mxu0 0.0
        %273 = vmatpush1.msra.mxu0 0.0
        %274 = vmatprep.subr.mxu0 0.0
        %275 = vmatpush1.msra.mxu0 0.0
        %276 = vmatprep.subr.mxu0 0.0
        %277 = vmatpush1.msra.mxu0 0.0
        %278 = vmatprep.subr.mxu0 0.0
        %279 = vmatpush1.msra.mxu0 0.0
        %280 = vmatprep.subr.mxu0 0.0
        %281 = vmatpush1.msra.mxu0 0.0
        %282 = vmatprep.subr.mxu0 0.0
        %283 = vmatpush1.msra.mxu0 0.0
        %284 = vmatprep.subr.mxu0 0.0
        %285 = vmatpush1.msra.mxu0 0.0
        %286 = vmatprep.subr.mxu0 0.0
        %287 = vmatpush1.msra.mxu0 0.0
        %288 = vmatprep.subr.mxu0 0.0
        %289 = vmatpush1.msra.mxu0 0.0
        %290 = vmatprep.subr.mxu0 0.0
        %291 = vmatpush1.msra.mxu0 0.0
        %292 = vmatprep.subr.mxu0 0.0
        %293 = vmatpush1.msra.mxu0 0.0
        %294 = vmatprep.mubr.f32.mxu0 0.0
        %295 = vmatmul.mubr.f32.gmra.mrb[0].mxu0 %v207
        %v296 = vpop.f32.mrb[0].mxu0
        %v297 = vadd.f32 0.0, %v296
        %v298 = vpop.f32.mrb[0].mxu0
        %299 = vmatprep.mubr.f32.mxu0 0.0
        %300 = vmatmul.mubr.f32.gmra.mrb[0].mxu0 %v210
        %v301 = vpop.f32.mrb[0].mxu0
        %v302 = vadd.f32 0.0, %v301
        %v303 = vpop.f32.mrb[0].mxu0
        %304 = vmatprep.mubr.f32.mxu0 0.0
        %305 = vmatmul.mubr.f32.gmra.mrb[0].mxu0 %v213
        %v306 = vpop.f32.mrb[0].mxu0
        %v307 = vadd.f32 0.0, %v306
        %v308 = vpop.f32.mrb[0].mxu0
        %309 = vmatprep.mubr.f32.mxu0 0.0
        %310 = vmatmul.mubr.f32.gmra.mrb[0].mxu0 %v216
        %v311 = vpop.f32.mrb[0].mxu0
        %v312 = vadd.f32 0.0, %v311
        %v313 = vpop.f32.mrb[0].mxu0
        %314 = vmatprep.mubr.f32.mxu0 0.0
        %315 = vmatmul.mubr.f32.gmra.mrb[0].mxu0 %v219
        %v316 = vpop.f32.mrb[0].mxu0
        %v317 = vadd.f32 0.0, %v316
        %v318 = vpop.f32.mrb[0].mxu0
        %319 = vmatprep.mubr.f32.mxu0 0.0
        %320 = vmatmul.mubr.f32.gmra.mrb[0].mxu0 %v222
        %v321 = vpop.f32.mrb[0].mxu0
        %v322 = vadd.f32 0.0, %v321
        %v323 = vpop.f32.mrb[0].mxu0
        %324 = vmatprep.mubr.f32.mxu0 0.0
        %325 = vmatmul.mubr.f32.gmra.mrb[0].mxu0 %v225
        %v326 = vpop.f32.mrb[0].mxu0
        %v327 = vadd.f32 0.0, %v326
        %v328 = vpop.f32.mrb[0].mxu0
        %329 = vmatprep.mubr.f32.mxu0 0.0
        %330 = vmatmul.mubr.f32.gmra.mrb[0].mxu0 %v228
        %v331 = vpop.f32.mrb[0].mxu0
        %v332 = vadd.f32 0.0, %v331
        %v333 = vpop.f32.mrb[0].mxu0
        %334 = vdwg.mxu0
        %v336 = vsel %vm205, %v194, 0
        %338 = vmatprep.subr.mxu0 0.0
        %339 = vmatpush1.msra.mxu0 %v297
        %340 = vmatprep.subr.mxu0 0.0
        %341 = vmatpush1.msra.mxu0 %v302
        %342 = vmatprep.subr.mxu0 0.0
        %343 = vmatpush1.msra.mxu0 0.0
        %344 = vmatprep.subr.mxu0 0.0
        %345 = vmatpush1.msra.mxu0 0.0
        %346 = vmatprep.subr.mxu0 0.0
        %347 = vmatpush1.msra.mxu0 0.0
        %348 = vmatprep.subr.mxu0 0.0
        %349 = vmatpush1.msra.mxu0 0.0
        %350 = vmatprep.subr.mxu0 0.0
        %351 = vmatpush1.msra.mxu0 0.0
        %352 = vmatprep.subr.mxu0 0.0
        %353 = vmatpush1.msra.mxu0 0.0
        %354 = vmatprep.subr.mxu0 0.0
        %355 = vmatpush1.msra.mxu0 0.0
        %356 = vmatprep.subr.mxu0 0.0
        %357 = vmatpush1.msra.mxu0 0.0
        %358 = vmatprep.subr.mxu0 0.0
        %359 = vmatpush1.msra.mxu0 0.0
        %360 = vmatprep.subr.mxu0 0.0
        %361 = vmatpush1.msra.mxu0 0.0
        %362 = vmatprep.subr.mxu0 0.0
        %363 = vmatpush1.msra.mxu0 0.0
        %364 = vmatprep.subr.mxu0 0.0
        %365 = vmatpush1.msra.mxu0 0.0
        %366 = vmatprep.subr.mxu0 0.0
        %367 = vmatpush1.msra.mxu0 0.0
        %368 = vmatprep.subr.mxu0 0.0
        %369 = vmatpush1.msra.mxu0 0.0
        %370 = vmatprep.subr.mxu0 0.0
        %371 = vmatpush1.msra.mxu0 0.0
        %372 = vmatprep.subr.mxu0 0.0
        %373 = vmatpush1.msra.mxu0 0.0
        %374 = vmatprep.subr.mxu0 0.0
        %375 = vmatpush1.msra.mxu0 0.0
        %376 = vmatprep.subr.mxu0 0.0
        %377 = vmatpush1.msra.mxu0 0.0
        %378 = vmatprep.subr.mxu0 0.0
        %379 = vmatpush1.msra.mxu0 0.0
        %380 = vmatprep.subr.mxu0 0.0
        %381 = vmatpush1.msra.mxu0 0.0
        %382 = vmatprep.subr.mxu0 0.0
        %383 = vmatpush1.msra.mxu0 0.0
        %384 = vmatprep.subr.mxu0 0.0
        %385 = vmatpush1.msra.mxu0 0.0
        %386 = vmatprep.subr.mxu0 0.0
        %387 = vmatpush1.msra.mxu0 0.0
        %388 = vmatprep.subr.mxu0 0.0
        %389 = vmatpush1.msra.mxu0 0.0
        %390 = vmatprep.subr.mxu0 0.0
        %391 = vmatpush1.msra.mxu0 0.0
        %392 = vmatprep.subr.mxu0 0.0
        %393 = vmatpush1.msra.mxu0 0.0
        %394 = vmatprep.subr.mxu0 0.0
        %395 = vmatpush1.msra.mxu0 0.0
        %396 = vmatprep.subr.mxu0 0.0
        %397 = vmatpush1.msra.mxu0 0.0
        %398 = vmatprep.subr.mxu0 0.0
        %399 = vmatpush1.msra.mxu0 0.0
        %400 = vmatprep.subr.mxu0 0.0
        %401 = vmatpush1.msra.mxu0 0.0
        %402 = vmatprep.mubr.f32.mxu0 0.0
        %403 = vmatmul.mubr.f32.gmra.mrb[0].mxu0 %v336
        %v404 = vpop.f32.mrb[0].mxu0
        %v405 = vadd.f32 0.0, %v404
        %v406 = vpop.f32.mrb[0].mxu0
        %407 = vdwg.mxu0
        %408 = vmatprep.subr.mxu0 0.0
        %409 = vmatpush1.msra.mxu0 %v307
        %410 = vmatprep.subr.mxu0 0.0
        %411 = vmatpush1.msra.mxu0 %v312
        %412 = vmatprep.subr.mxu0 0.0
        %413 = vmatpush1.msra.mxu0 0.0
        %414 = vmatprep.subr.mxu0 0.0
        %415 = vmatpush1.msra.mxu0 0.0
        %416 = vmatprep.subr.mxu0 0.0
        %417 = vmatpush1.msra.mxu0 0.0
        %418 = vmatprep.subr.mxu0 0.0
        %419 = vmatpush1.msra.mxu0 0.0
        %420 = vmatprep.subr.mxu0 0.0
        %421 = vmatpush1.msra.mxu0 0.0
        %422 = vmatprep.subr.mxu0 0.0
        %423 = vmatpush1.msra.mxu0 0.0
        %424 = vmatprep.subr.mxu0 0.0
        %425 = vmatpush1.msra.mxu0 0.0
        %426 = vmatprep.subr.mxu0 0.0
        %427 = vmatpush1.msra.mxu0 0.0
        %428 = vmatprep.subr.mxu0 0.0
        %429 = vmatpush1.msra.mxu0 0.0
        %430 = vmatprep.subr.mxu0 0.0
        %431 = vmatpush1.msra.mxu0 0.0
        %432 = vmatprep.subr.mxu0 0.0
        %433 = vmatpush1.msra.mxu0 0.0
        %434 = vmatprep.subr.mxu0 0.0
        %435 = vmatpush1.msra.mxu0 0.0
        %436 = vmatprep.subr.mxu0 0.0
        %437 = vmatpush1.msra.mxu0 0.0
        %438 = vmatprep.subr.mxu0 0.0
        %439 = vmatpush1.msra.mxu0 0.0
        %440 = vmatprep.subr.mxu0 0.0
        %441 = vmatpush1.msra.mxu0 0.0
        %442 = vmatprep.subr.mxu0 0.0
        %443 = vmatpush1.msra.mxu0 0.0
        %444 = vmatprep.subr.mxu0 0.0
        %445 = vmatpush1.msra.mxu0 0.0
        %446 = vmatprep.subr.mxu0 0.0
        %447 = vmatpush1.msra.mxu0 0.0
        %448 = vmatprep.subr.mxu0 0.0
        %449 = vmatpush1.msra.mxu0 0.0
        %450 = vmatprep.subr.mxu0 0.0
        %451 = vmatpush1.msra.mxu0 0.0
        %452 = vmatprep.subr.mxu0 0.0
        %453 = vmatpush1.msra.mxu0 0.0
        %454 = vmatprep.subr.mxu0 0.0
        %455 = vmatpush1.msra.mxu0 0.0
        %456 = vmatprep.subr.mxu0 0.0
        %457 = vmatpush1.msra.mxu0 0.0
        %458 = vmatprep.subr.mxu0 0.0
        %459 = vmatpush1.msra.mxu0 0.0
        %460 = vmatprep.subr.mxu0 0.0
        %461 = vmatpush1.msra.mxu0 0.0
        %462 = vmatprep.subr.mxu0 0.0
        %463 = vmatpush1.msra.mxu0 0.0
        %464 = vmatprep.subr.mxu0 0.0
        %465 = vmatpush1.msra.mxu0 0.0
        %466 = vmatprep.subr.mxu0 0.0
        %467 = vmatpush1.msra.mxu0 0.0
        %468 = vmatprep.subr.mxu0 0.0
        %469 = vmatpush1.msra.mxu0 0.0
        %470 = vmatprep.subr.mxu0 0.0
        %471 = vmatpush1.msra.mxu0 0.0
        %472 = vmatprep.mubr.f32.mxu0 0.0
        %473 = vmatmul.mubr.f32.gmra.mrb[0].mxu0 %v336
        %v474 = vpop.f32.mrb[0].mxu0
        %v475 = vadd.f32 0.0, %v474
        %v476 = vpop.f32.mrb[0].mxu0
        %477 = vdwg.mxu0
        %478 = vmatprep.subr.mxu0 0.0
        %479 = vmatpush1.msra.mxu0 %v317
        %480 = vmatprep.subr.mxu0 0.0
        %481 = vmatpush1.msra.mxu0 %v322
        %482 = vmatprep.subr.mxu0 0.0
        %483 = vmatpush1.msra.mxu0 0.0
        %484 = vmatprep.subr.mxu0 0.0
        %485 = vmatpush1.msra.mxu0 0.0
        %486 = vmatprep.subr.mxu0 0.0
        %487 = vmatpush1.msra.mxu0 0.0
        %488 = vmatprep.subr.mxu0 0.0
        %489 = vmatpush1.msra.mxu0 0.0
        %490 = vmatprep.subr.mxu0 0.0
        %491 = vmatpush1.msra.mxu0 0.0
        %492 = vmatprep.subr.mxu0 0.0
        %493 = vmatpush1.msra.mxu0 0.0
        %494 = vmatprep.subr.mxu0 0.0
        %495 = vmatpush1.msra.mxu0 0.0
        %496 = vmatprep.subr.mxu0 0.0
        %497 = vmatpush1.msra.mxu0 0.0
        %498 = vmatprep.subr.mxu0 0.0
        %499 = vmatpush1.msra.mxu0 0.0
        %500 = vmatprep.subr.mxu0 0.0
        %501 = vmatpush1.msra.mxu0 0.0
        %502 = vmatprep.subr.mxu0 0.0
        %503 = vmatpush1.msra.mxu0 0.0
        %504 = vmatprep.subr.mxu0 0.0
        %505 = vmatpush1.msra.mxu0 0.0
        %506 = vmatprep.subr.mxu0 0.0
        %507 = vmatpush1.msra.mxu0 0.0
        %508 = vmatprep.subr.mxu0 0.0
        %509 = vmatpush1.msra.mxu0 0.0
        %510 = vmatprep.subr.mxu0 0.0
        %511 = vmatpush1.msra.mxu0 0.0
        %512 = vmatprep.subr.mxu0 0.0
        %513 = vmatpush1.msra.mxu0 0.0
        %514 = vmatprep.subr.mxu0 0.0
        %515 = vmatpush1.msra.mxu0 0.0
        %516 = vmatprep.subr.mxu0 0.0
        %517 = vmatpush1.msra.mxu0 0.0
        %518 = vmatprep.subr.mxu0 0.0
        %519 = vmatpush1.msra.mxu0 0.0
        %520 = vmatprep.subr.mxu0 0.0
        %521 = vmatpush1.msra.mxu0 0.0
        %522 = vmatprep.subr.mxu0 0.0
        %523 = vmatpush1.msra.mxu0 0.0
        %524 = vmatprep.subr.mxu0 0.0
        %525 = vmatpush1.msra.mxu0 0.0
        %526 = vmatprep.subr.mxu0 0.0
        %527 = vmatpush1.msra.mxu0 0.0
        %528 = vmatprep.subr.mxu0 0.0
        %529 = vmatpush1.msra.mxu0 0.0
        %530 = vmatprep.subr.mxu0 0.0
        %531 = vmatpush1.msra.mxu0 0.0
        %532 = vmatprep.subr.mxu0 0.0
        %533 = vmatpush1.msra.mxu0 0.0
        %534 = vmatprep.subr.mxu0 0.0
        %535 = vmatpush1.msra.mxu0 0.0
        %536 = vmatprep.subr.mxu0 0.0
        %537 = vmatpush1.msra.mxu0 0.0
        %538 = vmatprep.subr.mxu0 0.0
        %539 = vmatpush1.msra.mxu0 0.0
        %540 = vmatprep.subr.mxu0 0.0
        %541 = vmatpush1.msra.mxu0 0.0
        %542 = vmatprep.mubr.f32.mxu0 0.0
        %543 = vmatmul.mubr.f32.gmra.mrb[0].mxu0 %v336
        %v544 = vpop.f32.mrb[0].mxu0
        %v545 = vadd.f32 0.0, %v544
        %v546 = vpop.f32.mrb[0].mxu0
        %547 = vdwg.mxu0
        %548 = vmatprep.subr.mxu0 0.0
        %549 = vmatpush1.msra.mxu0 %v327
        %550 = vmatprep.subr.mxu0 0.0
        %551 = vmatpush1.msra.mxu0 %v332
        %552 = vmatprep.subr.mxu0 0.0
        %553 = vmatpush1.msra.mxu0 0.0
        %554 = vmatprep.subr.mxu0 0.0
        %555 = vmatpush1.msra.mxu0 0.0
        %556 = vmatprep.subr.mxu0 0.0
        %557 = vmatpush1.msra.mxu0 0.0
        %558 = vmatprep.subr.mxu0 0.0
        %559 = vmatpush1.msra.mxu0 0.0
        %560 = vmatprep.subr.mxu0 0.0
        %561 = vmatpush1.msra.mxu0 0.0
        %562 = vmatprep.subr.mxu0 0.0
        %563 = vmatpush1.msra.mxu0 0.0
        %564 = vmatprep.subr.mxu0 0.0
        %565 = vmatpush1.msra.mxu0 0.0
        %566 = vmatprep.subr.mxu0 0.0
        %567 = vmatpush1.msra.mxu0 0.0
        %568 = vmatprep.subr.mxu0 0.0
        %569 = vmatpush1.msra.mxu0 0.0
        %570 = vmatprep.subr.mxu0 0.0
        %571 = vmatpush1.msra.mxu0 0.0
        %572 = vmatprep.subr.mxu0 0.0
        %573 = vmatpush1.msra.mxu0 0.0
        %574 = vmatprep.subr.mxu0 0.0
        %575 = vmatpush1.msra.mxu0 0.0
        %576 = vmatprep.subr.mxu0 0.0
        %577 = vmatpush1.msra.mxu0 0.0
        %578 = vmatprep.subr.mxu0 0.0
        %579 = vmatpush1.msra.mxu0 0.0
        %580 = vmatprep.subr.mxu0 0.0
        %581 = vmatpush1.msra.mxu0 0.0
        %582 = vmatprep.subr.mxu0 0.0
        %583 = vmatpush1.msra.mxu0 0.0
        %584 = vmatprep.subr.mxu0 0.0
        %585 = vmatpush1.msra.mxu0 0.0
        %586 = vmatprep.subr.mxu0 0.0
        %587 = vmatpush1.msra.mxu0 0.0
        %588 = vmatprep.subr.mxu0 0.0
        %589 = vmatpush1.msra.mxu0 0.0
        %590 = vmatprep.subr.mxu0 0.0
        %591 = vmatpush1.msra.mxu0 0.0
        %592 = vmatprep.subr.mxu0 0.0
        %593 = vmatpush1.msra.mxu0 0.0
        %594 = vmatprep.subr.mxu0 0.0
        %595 = vmatpush1.msra.mxu0 0.0
        %596 = vmatprep.subr.mxu0 0.0
        %597 = vmatpush1.msra.mxu0 0.0
        %598 = vmatprep.subr.mxu0 0.0
        %599 = vmatpush1.msra.mxu0 0.0
        %600 = vmatprep.subr.mxu0 0.0
        %601 = vmatpush1.msra.mxu0 0.0
        %602 = vmatprep.subr.mxu0 0.0
        %603 = vmatpush1.msra.mxu0 0.0
        %604 = vmatprep.subr.mxu0 0.0
        %605 = vmatpush1.msra.mxu0 0.0
        %606 = vmatprep.subr.mxu0 0.0
        %607 = vmatpush1.msra.mxu0 0.0
        %608 = vmatprep.subr.mxu0 0.0
        %609 = vmatpush1.msra.mxu0 0.0
        %610 = vmatprep.subr.mxu0 0.0
        %611 = vmatpush1.msra.mxu0 0.0
        %612 = vmatprep.mubr.f32.mxu0 0.0
        %613 = vmatmul.mubr.f32.gmra.mrb[0].mxu0 %v336
        %v614 = vpop.f32.mrb[0].mxu0
        %v615 = vadd.f32 0.0, %v614
        %v616 = vpop.f32.mrb[0].mxu0
        %617 = vdwg.mxu0
        %vm618 = vcmask 27648
        %619 = vst.msk [vmem:[%s192] sm:$0xf] %vm618, %v405
        %620 = vst.msk [vmem:[%s192 + $0x4] sm:$0xf] %vm618, %v475
        %621 = vst.msk [vmem:[%s192 + $0x8] sm:$0xf] %vm618, %v545
        %622 = vst.msk [vmem:[%s192 + $0xc] sm:$0xf] %vm618, %v615
        %s623 = smul.u32 4, %s17
        %p624 = scmp.lt.s32.totalorder %s623, 7
        %s625 = scalar_select %p624, %s623, 7
        %s626 = smul.addr %s625, 4
        %s627 = scalar_lea.vmem %s3, %s626
        // Predicated region
        $region37: #{tpu_custom_call.1} parent=31 // pred_check
          %p628 = pneg %p103
        $region38: #{tpu_custom_call.1} parent=31 // pred_check_branch
          %630 = sbr.rel (%p628) target = $region40
        $region39: #{tpu_custom_call.1} parent=31 // pred_region
          %s631 = smul.u32 4, %s17
        $region40: #{tpu_custom_call.1} parent=31 // pred_fallthru
          _
      $region32: #{tpu_custom_call.1} parent=5 // pred_fallthru
        _
      %p632 = scmp.le.s32.totalorder 2, %s12
      // Predicated region
      $region41: #{tpu_custom_call.1} parent=5 // pred_check
        %p633 = pneg %p632
      $region42: #{tpu_custom_call.1} parent=5 // pred_check_branch
        %635 = sbr.rel (%p633) target = $region44
      $region43: #{tpu_custom_call.1} parent=5 // pred_region
        %s636 = ssub.s32 %s12, 2
        // Predicated region
        $region45: #{tpu_custom_call.1} parent=43 // pred_check
          %p637 = pneg %p109
        $region46: #{tpu_custom_call.1} parent=43 // pred_check_branch
          %639 = sbr.rel (%p637) target = $region48
        $region47: #{tpu_custom_call.1} parent=43 // pred_region
          %s640 = smul.u32 4, %s18
          %p641 = scmp.lt.s32.totalorder %s640, 7
          %s642 = scalar_select %p641, %s640, 7
          %s643 = smul.addr %s642, 4
          %s644 = scalar_lea.vmem %s3, %s643
        $region48: #{tpu_custom_call.1} parent=43 // pred_fallthru
          _
      $region44: #{tpu_custom_call.1} parent=5 // pred_fallthru
        _
    $region6: #{tpu_custom_call.1} parent=1 // loop_footer
      %s16 = sadd.s32 1, %s12
    $region7: #{tpu_custom_call.1} parent=1 // loop_footer_branch
      %11 = sbr.rel target = $region3
    $region8: #{tpu_custom_call.1} parent=1 // loop_exit
      _
    %645 = vsyncpa [#allocation3], 1
    %s646 = scalar_lea.sflag [#allocation3], 1
    %647 = vsyncpa %s646, 1

</llo_original>
